<compile_context>
chip_gen: v7x
topology: tpu7x:2x2x1
jax: 0.10.0
libtpu: 0.0.40
codegen_flags: <defaults>
</compile_context>

<pallas_src>
import jax
import jax.numpy as jnp
from jax.experimental import pallas as pl
from jax.experimental.pallas import tpu as pltpu

LANE = 128
SUBLANE = 8


def _round_up(n, m):
    return ((n + m - 1) // m) * m


# --------------------------------------------------------------------------
# Host-side packing (do once): fuse heads, pad to lane-dense shapes, pack biases
# --------------------------------------------------------------------------
def pack_params(params, param_dtype=jnp.float32):
    ws = [params["w_in"]] + [w for (w, _) in params["hidden"]]
    bs = [params["b_in"]] + [b for (_, b) in params["hidden"]]

    out_dim = params["w_adv"].shape[1]
    # fused head: columns [0:out_dim] = advantage head, column [out_dim] = value head
    ws.append(jnp.concatenate([params["w_adv"], params["w_val"]], axis=1))
    bs.append(jnp.concatenate([params["b_adv"], params["b_val"]], axis=1))

    padded_ws = []
    for w in ws:
        di, do = w.shape
        wp = jnp.zeros((_round_up(di, LANE), _round_up(do, LANE)), jnp.float32)
        padded_ws.append(wp.at[:di, :do].set(w).astype(param_dtype))

    d_out_max = max(w.shape[1] for w in padded_ws)
    bias_pack = jnp.zeros((len(bs), d_out_max), jnp.float32)  # biases stay f32
    for l, b in enumerate(bs):
        bias_pack = bias_pack.at[l, : b.shape[1]].set(b[0])

    return {
        "weights": padded_ws,       # list of [Din_pad, Dout_pad] in param_dtype
        "biases": bias_pack,        # [n_layers, Dout_max] float32
        "out_dim": out_dim,         # python int (static)
    }


# --------------------------------------------------------------------------
# Kernel
# --------------------------------------------------------------------------
def _make_kernel(n_layers, out_dim, block_b, b_real):
    def kernel(x_ref, *refs):
        w_refs = refs[:n_layers]
        bias_ref = refs[n_layers]
        q_ref = refs[n_layers + 1]
        sum_ref = refs[n_layers + 2]

        h = x_ref[...]
        fused = None
        for l in range(n_layers):
            w = w_refs[l][...]
            acc = jnp.dot(h.astype(w.dtype), w, preferred_element_type=jnp.float32)
            acc = acc + bias_ref[l : l + 1, : w.shape[1]]     # f32 bias add
            if l + 1 < n_layers:
                h = jnp.maximum(acc, 0.0)                      # ReLU kept in f32
            else:
                fused = acc                                    # [block_b, head_pad]

        # fused columns: [0:out_dim] = advantages, [out_dim] = value, rest = 0 pad
        col_ids = jax.lax.broadcasted_iota(jnp.int32, fused.shape, 1)
        val = jnp.sum(jnp.where(col_ids == out_dim, fused, 0.0),
                      axis=1, keepdims=True)                   # [block_b, 1] (exact pick)

        # lane-dense store of the un-normalized q block (val + adv in real columns)
        q_ref[...] = fused + val

        # masked per-tile column sums -> global advantage mean finished by wrapper
        tile = pl.program_id(0)
        rows = jax.lax.broadcasted_iota(jnp.int32, (block_b, 1), 0) + tile * block_b
        masked = jnp.where(rows < b_real, fused, 0.0)          # drop batch-pad rows
        colsum = jnp.sum(masked, axis=0, keepdims=True)        # [1, head_pad]
        sum_ref[0, :, :] = jnp.broadcast_to(colsum, (SUBLANE, colsum.shape[1]))

    return kernel


# --------------------------------------------------------------------------
# Wrapper
# --------------------------------------------------------------------------
def dueling_net_forward(x, packed, *, block_b=256):
    weights = packed["weights"]
    biases = packed["biases"]
    out_dim = packed["out_dim"]
    n_layers = len(weights)

    B, in_dim = x.shape
    in_pad = weights[0].shape[0]
    head_pad = weights[-1].shape[1]

    # batch tiling: single tile for small B, otherwise a 'parallel' batch grid
    if B <= block_b:
        tb = _round_up(B, SUBLANE)
    else:
        tb = _round_up(block_b, SUBLANE)
    Bp = _round_up(B, tb)
    nb = Bp // tb

    x_pad = (
        jnp.zeros((Bp, in_pad), jnp.float32)
        .at[:B, :in_dim]
        .set(x)
        .astype(weights[0].dtype)
    )

    kernel = _make_kernel(n_layers, out_dim, tb, B)

    flops = 2 * Bp * sum(w.shape[0] * w.shape[1] for w in weights)
    bytes_accessed = (
        x_pad.size * x_pad.dtype.itemsize
        + sum(w.size * w.dtype.itemsize for w in weights)
        + biases.size * 4
        + Bp * head_pad * 4
        + nb * SUBLANE * head_pad * 4
    )

    in_specs = [pl.BlockSpec((tb, in_pad), lambda i: (i, 0))]
    in_specs += [pl.BlockSpec(w.shape, lambda i: (0, 0)) for w in weights]  # resident
    in_specs += [pl.BlockSpec(biases.shape, lambda i: (0, 0))]

    raw, colsums = pl.pallas_call(
        kernel,
        out_shape=(
            jax.ShapeDtypeStruct((Bp, head_pad), jnp.float32),
            jax.ShapeDtypeStruct((nb, SUBLANE, head_pad), jnp.float32),
        ),
        grid=(nb,),
        in_specs=in_specs,
        out_specs=(
            pl.BlockSpec((tb, head_pad), lambda i: (i, 0)),
            pl.BlockSpec((1, SUBLANE, head_pad), lambda i: (i, 0, 0)),
        ),
        compiler_params=pltpu.CompilerParams(
            dimension_semantics=("parallel",),
        ),
        cost_estimate=pl.CostEstimate(
            flops=flops, transcendentals=0, bytes_accessed=bytes_accessed
        ),
    )(x_pad, *weights, biases)

    # finish the GLOBAL advantage mean (torch: advantages.mean() over all elements)
    adv_mean = jnp.sum(colsums[:, 0, :out_dim]) / (B * out_dim)
    return raw[:B, :out_dim] - adv_mean


# --------------------------------------------------------------------------
# Pure-JAX reference (mirrors the PyTorch forward) and init
# --------------------------------------------------------------------------
def _ref_forward(x, params):
    h = jax.nn.relu(x @ params["w_in"] + params["b_in"])
    for w, b in params["hidden"]:
        h = jax.nn.relu(h @ w + b)
    adv = h @ params["w_adv"] + params["b_adv"]
    val = h @ params["w_val"] + params["b_val"]
    return val + (adv - jnp.mean(adv))


def init_params(key, in_dim, out_dim, h_dims):
    keys = jax.random.split(key, 2 * (len(h_dims) + 2) + 2)
    ki = iter(range(len(keys)))

    def linear(in_f, out_f):
        kw = keys[next(ki)]
        kb = keys[next(ki)]
        bound = 1.0 / jnp.sqrt(in_f)
        w = jax.random.uniform(kw, (in_f, out_f), jnp.float32, -bound, bound)
        b = jax.random.uniform(kb, (1, out_f), jnp.float32, -bound, bound)
        return w, b

    w_in, b_in = linear(in_dim, h_dims[0])
    hidden = []
    for i in range(len(h_dims) - 1):
        hidden.append(linear(h_dims[i], h_dims[i + 1]))
    w_val, b_val = linear(h_dims[-1], 1)
    w_adv, b_adv = linear(h_dims[-1], out_dim)
    return {
        "w_in": w_in, "b_in": b_in,
        "hidden": hidden,
        "w_adv": w_adv, "b_adv": b_adv,
        "w_val": w_val, "b_val": b_val,
    }


if __name__ == "__main__":
    key = jax.random.PRNGKey(0)
    k_x, k_p, k_x2 = jax.random.split(key, 3)

    B, in_dim, out_dim = 8, 16, 4
    h_dims = [32, 32]

    x = jax.random.normal(k_x, (B, in_dim), jnp.float32)
    params = init_params(k_p, in_dim, out_dim, h_dims)

    # f32 path: must match the pure-JAX reference
    packed = pack_params(params, param_dtype=jnp.float32)
    q = jax.block_until_ready(dueling_net_forward(x, packed))
    q_ref = _ref_forward(x, params)
    assert q.shape == (B, out_dim)
    assert jnp.allclose(q, q_ref, atol=1e-3, rtol=1e-3), "f32 mismatch vs reference"

    # multi-tile batch: exercises the 'parallel' batch grid + masked global mean
    B2 = 300
    x2 = jax.random.normal(k_x2, (B2, in_dim), jnp.float32)
    q2 = jax.block_until_ready(dueling_net_forward(x2, packed, block_b=128))
    q2_ref = _ref_forward(x2, params)
    assert q2.shape == (B2, out_dim)
    assert jnp.allclose(q2, q2_ref, atol=1e-3, rtol=1e-3), "tiled mismatch vs reference"

    # bf16 MXU path (weights/activations bf16, f32 accumulation + f32 elementwise)
    packed_bf16 = pack_params(params, param_dtype=jnp.bfloat16)
    q_bf = jax.block_until_ready(dueling_net_forward(x, packed_bf16))
    assert q_bf.shape == (B, out_dim)
    assert bool(jnp.all(jnp.isfinite(q_bf)))
    assert jnp.allclose(q_bf, q_ref, atol=0.5, rtol=0.5), "bf16 path grossly off"

    print("KERNEL_OK")
</pallas_src>

<mosaic_0001>
module attributes {stable_mosaic.version = 11 : i64} {
  func.func @kernel(%arg0: i32, %arg1: memref<8x128xf32, #tpu.memory_space<vmem>>, %arg2: memref<128x128xf32, #tpu.memory_space<vmem>>, %arg3: memref<128x128xf32, #tpu.memory_space<vmem>>, %arg4: memref<128x128xf32, #tpu.memory_space<vmem>>, %arg5: memref<3x128xf32, #tpu.memory_space<vmem>>, %arg6: memref<8x128xf32, #tpu.memory_space<vmem>>, %arg7: memref<1x8x128xf32, #tpu.memory_space<vmem>>) attributes {dimension_semantics = [#tpu.dimension_semantics<parallel>], iteration_bounds = array<i64: 1>, scalar_prefetch = 0 : i64, scratch_operands = 0 : i64, tpu.core_type = #tpu.core_type<tc>, window_params = [{transform_indices = @transform_0, window_bounds = array<i64: 8, 128>}, {pipeline_mode = #tpu.pipeline_mode<synchronous>, transform_indices = @transform_1, window_bounds = array<i64: 128, 128>}, {pipeline_mode = #tpu.pipeline_mode<synchronous>, transform_indices = @transform_2, window_bounds = array<i64: 128, 128>}, {pipeline_mode = #tpu.pipeline_mode<synchronous>, transform_indices = @transform_3, window_bounds = array<i64: 128, 128>}, {pipeline_mode = #tpu.pipeline_mode<synchronous>, transform_indices = @transform_4, window_bounds = array<i64: 3, 128>}, {transform_indices = @transform_5, window_bounds = array<i64: 8, 128>}, {transform_indices = @transform_6, window_bounds = array<i64: 1, 8, 128>}]} {
    %c0 = arith.constant 0 : index
    %c0_0 = arith.constant 0 : index
    %0 = vector.load %arg1[%c0, %c0_0] : memref<8x128xf32, #tpu.memory_space<vmem>>, vector<8x128xf32>
    %c0_1 = arith.constant 0 : index
    %c0_2 = arith.constant 0 : index
    %1 = vector.load %arg2[%c0_1, %c0_2] : memref<128x128xf32, #tpu.memory_space<vmem>>, vector<128x128xf32>
    %cst = arith.constant dense<0.000000e+00> : vector<8x128xf32>
    %2 = tpu.matmul %0, %1, %cst {dimension_numbers = #tpu.dot_dimension_numbers<[1], [0], [0], [1], [0, 0, 1, 1], [], []>} : vector<8x128xf32>, vector<128x128xf32>, vector<8x128xf32> -> vector<8x128xf32>
    %c0_3 = arith.constant 0 : index
    %c0_4 = arith.constant 0 : index
    %3 = vector.load %arg5[%c0_3, %c0_4] : memref<3x128xf32, #tpu.memory_space<vmem>>, vector<1x128xf32>
    %4 = vector.broadcast %3 : vector<1x128xf32> to vector<8x128xf32>
    %5 = arith.addf %2, %4 : vector<8x128xf32>
    %cst_5 = arith.constant 0.000000e+00 : f32
    %6 = vector.broadcast %cst_5 : f32 to vector<8x128xf32>
    %7 = arith.maximumf %5, %6 : vector<8x128xf32>
    %c0_6 = arith.constant 0 : index
    %c0_7 = arith.constant 0 : index
    %8 = vector.load %arg3[%c0_6, %c0_7] : memref<128x128xf32, #tpu.memory_space<vmem>>, vector<128x128xf32>
    %cst_8 = arith.constant dense<0.000000e+00> : vector<8x128xf32>
    %9 = tpu.matmul %7, %8, %cst_8 {dimension_numbers = #tpu.dot_dimension_numbers<[1], [0], [0], [1], [0, 0, 1, 1], [], []>} : vector<8x128xf32>, vector<128x128xf32>, vector<8x128xf32> -> vector<8x128xf32>
    %c1 = arith.constant 1 : index
    %c0_9 = arith.constant 0 : index
    %10 = vector.load %arg5[%c1, %c0_9] : memref<3x128xf32, #tpu.memory_space<vmem>>, vector<1x128xf32>
    %11 = vector.broadcast %10 : vector<1x128xf32> to vector<8x128xf32>
    %12 = arith.addf %9, %11 : vector<8x128xf32>
    %cst_10 = arith.constant 0.000000e+00 : f32
    %13 = vector.broadcast %cst_10 : f32 to vector<8x128xf32>
    %14 = arith.maximumf %12, %13 : vector<8x128xf32>
    %c0_11 = arith.constant 0 : index
    %c0_12 = arith.constant 0 : index
    %15 = vector.load %arg4[%c0_11, %c0_12] : memref<128x128xf32, #tpu.memory_space<vmem>>, vector<128x128xf32>
    %cst_13 = arith.constant dense<0.000000e+00> : vector<8x128xf32>
    %16 = tpu.matmul %14, %15, %cst_13 {dimension_numbers = #tpu.dot_dimension_numbers<[1], [0], [0], [1], [0, 0, 1, 1], [], []>} : vector<8x128xf32>, vector<128x128xf32>, vector<8x128xf32> -> vector<8x128xf32>
    %c2 = arith.constant 2 : index
    %c0_14 = arith.constant 0 : index
    %17 = vector.load %arg5[%c2, %c0_14] : memref<3x128xf32, #tpu.memory_space<vmem>>, vector<1x128xf32>
    %18 = vector.broadcast %17 : vector<1x128xf32> to vector<8x128xf32>
    %19 = arith.addf %16, %18 : vector<8x128xf32>
    %20 = tpu.iota {dimensions = array<i32: 1>} : vector<8x128xi32>
    %c4_i32 = arith.constant 4 : i32
    %21 = vector.broadcast %c4_i32 : i32 to vector<8x128xi32>
    %22 = arith.cmpi eq, %20, %21 : vector<8x128xi32>
    %cst_15 = arith.constant 0.000000e+00 : f32
    %23 = vector.broadcast %cst_15 : f32 to vector<8x128xf32>
    %24 = arith.select %22, %19, %23 : vector<8x128xi1>, vector<8x128xf32>
    %cst_16 = arith.constant dense<0.000000e+00> : vector<8xf32>
    %25 = vector.multi_reduction <add>, %24, %cst_16 [1] : vector<8x128xf32> to vector<8xf32>
    %26 = vector.shape_cast %25 : vector<8xf32> to vector<8x1xf32>
    %27 = vector.broadcast %26 : vector<8x1xf32> to vector<8x128xf32>
    %28 = arith.addf %19, %27 : vector<8x128xf32>
    %c0_17 = arith.constant 0 : index
    %c0_18 = arith.constant 0 : index
    %29 = vector.load %arg6[%c0_17, %c0_18] : memref<8x128xf32, #tpu.memory_space<vmem>>, vector<8x128xf32>
    tpu.vector_store %arg6[%c0_17, %c0_18], %28 {strides = array<i32>} : memref<8x128xf32, #tpu.memory_space<vmem>>, vector<8x128xf32>,
    %30 = tpu.iota {dimensions = array<i32: 0>} : vector<8x1xi32>
    %c8_i32 = arith.constant 8 : i32
    %31 = arith.muli %arg0, %c8_i32 : i32
    %32 = vector.broadcast %31 : i32 to vector<8x1xi32>
    %33 = arith.addi %30, %32 : vector<8x1xi32>
    %c8_i32_19 = arith.constant 8 : i32
    %34 = vector.broadcast %c8_i32_19 : i32 to vector<8x1xi32>
    %35 = arith.cmpi slt, %33, %34 : vector<8x1xi32>
    %cst_20 = arith.constant 0.000000e+00 : f32
    %36 = vector.shape_cast %35 : vector<8x1xi1> to vector<8x1xi1>
    %37 = vector.broadcast %36 : vector<8x1xi1> to vector<8x128xi1>
    %38 = vector.broadcast %cst_20 : f32 to vector<8x128xf32>
    %39 = arith.select %37, %19, %38 : vector<8x128xi1>, vector<8x128xf32>
    %cst_21 = arith.constant dense<0.000000e+00> : vector<128xf32>
    %40 = vector.multi_reduction <add>, %39, %cst_21 [0] : vector<8x128xf32> to vector<128xf32>
    %41 = vector.shape_cast %40 : vector<128xf32> to vector<1x128xf32>
    %42 = vector.shape_cast %41 : vector<1x128xf32> to vector<1x128xf32>
    %43 = vector.broadcast %42 : vector<1x128xf32> to vector<8x128xf32>
    %c0_22 = arith.constant 0 : index
    %c0_23 = arith.constant 0 : index
    %c0_24 = arith.constant 0 : index
    %44 = vector.load %arg7[%c0_22, %c0_23, %c0_24] : memref<1x8x128xf32, #tpu.memory_space<vmem>>, vector<1x8x128xf32>
    %45 = vector.shape_cast %44 : vector<1x8x128xf32> to vector<8x128xf32>
    %46 = vector.shape_cast %43 : vector<8x128xf32> to vector<1x8x128xf32>
    tpu.vector_store %arg7[%c0_22, %c0_23, %c0_24], %46 {strides = array<i32>} : memref<1x8x128xf32, #tpu.memory_space<vmem>>, vector<1x8x128xf32>,
    return
  }
  func.func @transform_0(%arg0: i32) -> (i32, i32) {
    %c0_i32 = arith.constant 0 : i32
    %c0_i32_0 = arith.constant 0 : i32
    return %arg0, %c0_i32 : i32, i32
  }
  func.func @transform_1(%arg0: i32) -> (i32, i32) {
    %c0_i32 = arith.constant 0 : i32
    %c0_i32_0 = arith.constant 0 : i32
    %c0_i32_1 = arith.constant 0 : i32
    return %c0_i32, %c0_i32_0 : i32, i32
  }
  func.func @transform_2(%arg0: i32) -> (i32, i32) {
    %c0_i32 = arith.constant 0 : i32
    %c0_i32_0 = arith.constant 0 : i32
    %c0_i32_1 = arith.constant 0 : i32
    return %c0_i32, %c0_i32_0 : i32, i32
  }
  func.func @transform_3(%arg0: i32) -> (i32, i32) {
    %c0_i32 = arith.constant 0 : i32
    %c0_i32_0 = arith.constant 0 : i32
    %c0_i32_1 = arith.constant 0 : i32
    return %c0_i32, %c0_i32_0 : i32, i32
  }
  func.func @transform_4(%arg0: i32) -> (i32, i32) {
    %c0_i32 = arith.constant 0 : i32
    %c0_i32_0 = arith.constant 0 : i32
    %c0_i32_1 = arith.constant 0 : i32
    return %c0_i32, %c0_i32_0 : i32, i32
  }
  func.func @transform_5(%arg0: i32) -> (i32, i32) {
    %c0_i32 = arith.constant 0 : i32
    %c0_i32_0 = arith.constant 0 : i32
    return %arg0, %c0_i32 : i32, i32
  }
  func.func @transform_6(%arg0: i32) -> (i32, i32, i32) {
    %c0_i32 = arith.constant 0 : i32
    %c0_i32_0 = arith.constant 0 : i32
    %c0_i32_1 = arith.constant 0 : i32
    return %arg0, %c0_i32, %c0_i32_0 : i32, i32, i32
  }
}

</mosaic_0001>

<llo_original>
// kernel: tpu_custom_call.1
$region0: #{tpu_custom_call.1}
  #allocation0 [shape = 'u32[]', space=smem, size = 0x4, offset = 0x4, fixed_abs, tag = 'smem constant byte address 0x4 - core index']
  #allocation1 [shape = 'u32[144,128]{1,0:T(1,128)}', space=vmem, size = 0x12000, scoped, tag = 'internal scratch']
  %s0 = inlined_call_operand.hbm [shape: f32[8,128], index: 0, kind: input, shape index: {}]
  %s1 = inlined_call_operand.hbm [shape: f32[128,128], index: 1, kind: input, shape index: {}]
  %s2 = inlined_call_operand.hbm [shape: f32[128,128], index: 2, kind: input, shape index: {}]
  %s3 = inlined_call_operand.hbm [shape: f32[128,128], index: 3, kind: input, shape index: {}]
  %s4 = inlined_call_operand.vmem [shape: f32[3,128], index: 4, kind: input, shape index: {}]
  %s5 = inlined_call_operand.hbm [shape: f32[8,128], index: 5, kind: output, shape index: {0}]
  %s6 = inlined_call_operand.hbm [shape: f32[1,8,128], index: 6, kind: output, shape index: {1}]
  %7 = xla_tuple %s5, %s6
  %s8 = sld [smem:[#allocation0]]
  $region54: #{tpu_custom_call.1} parent=0
    _
  %s10 = ssub.s32 1, %s8
  %s11 = scalar_select 0, %s10, %s8
  $region1: #{tpu_custom_call.1} parent=0
    #allocation2 [shape = 'u8[4096]{0}', space=vmem, size = 0x1000, scoped, tag = 'input window, operand 0, single buffered']
    #allocation3 [shape = 's32[1]{0}', space=sflag, size = 0x4, scoped, tag = 'scoped memory for tpu_custom_call.1']
    #allocation4 [shape = 's32[1]{0}', space=sflag, size = 0x4, scoped, tag = 'scoped memory for tpu_custom_call.1']
    #allocation5 [shape = 'u8[65536]{0}', space=vmem, size = 0x10000, scoped, tag = 'input window, operand 1, single buffered']
    #allocation6 [shape = 's32[1]{0}', space=sflag, size = 0x4, scoped, tag = 'scoped memory for tpu_custom_call.1']
    #allocation7 [shape = 'u8[65536]{0}', space=vmem, size = 0x10000, scoped, tag = 'input window, operand 2, single buffered']
    #allocation8 [shape = 'u8[65536]{0}', space=vmem, size = 0x10000, scoped, tag = 'input window, operand 3, single buffered']
    #allocation9 [shape = 's32[1]{0}', space=sflag, size = 0x4, scoped, tag = 'scoped memory for tpu_custom_call.1']
    #allocation10 [shape = 'u8[4096]{0}', space=vmem, size = 0x1000, scoped, tag = 'output window, operand 0, single buffered']
    #allocation11 [shape = 'u8[4096]{0}', space=vmem, size = 0x1000, scoped, tag = 'output window, operand 1, single buffered']
    #allocation12 [shape = 's32[1]{0}', space=sflag, size = 0x4, scoped, tag = 'scoped memory for tpu_custom_call.1']
    %12 = vsyncpa [#allocation3], 0
    %13 = vsyncpa [#allocation6], 0
    %14 = vsyncpa [#allocation9], 0
    %15 = vsyncpa [#allocation4], 0
    %16 = vsyncpa [#allocation12], 0
    // Predicated region
    $region2: #{tpu_custom_call.1} parent=1 // pred_check
      _
    $region3: #{tpu_custom_call.1} parent=1 // pred_check_branch
      %18 = sbr.rel (0) target = $region5
    $region4: #{tpu_custom_call.1} parent=1 // pred_region
      %s20 = ssub.s32 128, 128
      %21 = vsyncadd [#allocation3], %s20
      %s23 = sshll.u32 [#allocation2], 4
      %s24 = int_to_ptr.vmem [resolvable:$true] %s23
      %26 = dma.hbm_to_vmem [thread:$0]  %s0, 128, %s24, [#allocation3]
    $region5: #{tpu_custom_call.1} parent=1 // pred_fallthru
      _
    // Predicated region
    $region6: #{tpu_custom_call.1} parent=1 // pred_check
      _
    $region7: #{tpu_custom_call.1} parent=1 // pred_check_branch
      %28 = sbr.rel (0) target = $region9
    $region8: #{tpu_custom_call.1} parent=1 // pred_region
      %s30 = ssub.s32 2048, 2048
      %31 = vsyncadd [#allocation6], %s30
      %s32 = sshll.u32 [#allocation5], 4
      %s33 = int_to_ptr.vmem [resolvable:$true] %s32
      %38 = dma.hbm_to_vmem [thread:$0]  %s1, 2048, %s33, [#allocation6], 128, 128, 8
    $region9: #{tpu_custom_call.1} parent=1 // pred_fallthru
      _
    // Predicated region
    $region10: #{tpu_custom_call.1} parent=1 // pred_check
      _
    $region11: #{tpu_custom_call.1} parent=1 // pred_check_branch
      %40 = sbr.rel (0) target = $region13
    $region12: #{tpu_custom_call.1} parent=1 // pred_region
      %s42 = ssub.s32 2048, 2048
      %43 = vsyncadd [#allocation6], %s42
      %s44 = sshll.u32 [#allocation7], 4
      %s45 = int_to_ptr.vmem [resolvable:$true] %s44
      %50 = dma.hbm_to_vmem [thread:$0]  %s2, 2048, %s45, [#allocation6], 128, 128, 8
    $region13: #{tpu_custom_call.1} parent=1 // pred_fallthru
      _
    // Predicated region
    $region14: #{tpu_custom_call.1} parent=1 // pred_check
      _
    $region15: #{tpu_custom_call.1} parent=1 // pred_check_branch
      %52 = sbr.rel (0) target = $region17
    $region16: #{tpu_custom_call.1} parent=1 // pred_region
      %s54 = ssub.s32 2048, 2048
      %55 = vsyncadd [#allocation9], %s54
      %s56 = sshll.u32 [#allocation8], 4
      %s57 = int_to_ptr.vmem [resolvable:$true] %s56
      %62 = dma.hbm_to_vmem [thread:$0]  %s3, 2048, %s57, [#allocation9], 128, 128, 8
    $region17: #{tpu_custom_call.1} parent=1 // pred_fallthru
      _
    // Predicated region
    $region18: #{tpu_custom_call.1} parent=1 // pred_check
      _
    $region19: #{tpu_custom_call.1} parent=1 // pred_check_branch
      %64 = sbr.rel (0) target = $region21
    $region20: #{tpu_custom_call.1} parent=1 // pred_region
      _
    $region21: #{tpu_custom_call.1} parent=1 // pred_fallthru
      _
    // Predicated region
    $region22: #{tpu_custom_call.1} parent=1 // pred_check
      _
    $region23: #{tpu_custom_call.1} parent=1 // pred_check_branch
      %66 = sbr.rel (0) target = $region25
    $region24: #{tpu_custom_call.1} parent=1 // pred_region
      %67 = dma.done [#allocation3], 128
    $region25: #{tpu_custom_call.1} parent=1 // pred_fallthru
      _
    // Predicated region
    $region26: #{tpu_custom_call.1} parent=1 // pred_check
      _
    $region27: #{tpu_custom_call.1} parent=1 // pred_check_branch
      %69 = sbr.rel (0) target = $region29
    $region28: #{tpu_custom_call.1} parent=1 // pred_region
      %70 = dma.done [#allocation6], 2048
    $region29: #{tpu_custom_call.1} parent=1 // pred_fallthru
      _
    // Predicated region
    $region30: #{tpu_custom_call.1} parent=1 // pred_check
      _
    $region31: #{tpu_custom_call.1} parent=1 // pred_check_branch
      %72 = sbr.rel (0) target = $region33
    $region32: #{tpu_custom_call.1} parent=1 // pred_region
      %73 = dma.done [#allocation6], 2048
    $region33: #{tpu_custom_call.1} parent=1 // pred_fallthru
      _
    // Predicated region
    $region34: #{tpu_custom_call.1} parent=1 // pred_check
      _
    $region35: #{tpu_custom_call.1} parent=1 // pred_check_branch
      %75 = sbr.rel (0) target = $region37
    $region36: #{tpu_custom_call.1} parent=1 // pred_region
      %76 = dma.done [#allocation9], 2048
    $region37: #{tpu_custom_call.1} parent=1 // pred_fallthru
      _
    %v77 = vld [vmem:[#allocation2] sm:$0xff]
    %v78 = vld [vmem:[#allocation5] sm:$0xff]
    %v79 = vld [vmem:[#allocation5 + $0x8] sm:$0xff]
    %v80 = vld [vmem:[#allocation5 + $0x10] sm:$0xff]
    %v81 = vld [vmem:[#allocation5 + $0x18] sm:$0xff]
    %v82 = vld [vmem:[#allocation5 + $0x20] sm:$0xff]
    %v83 = vld [vmem:[#allocation5 + $0x28] sm:$0xff]
    %v84 = vld [vmem:[#allocation5 + $0x30] sm:$0xff]
    %v85 = vld [vmem:[#allocation5 + $0x38] sm:$0xff]
    %v86 = vld [vmem:[#allocation5 + $0x40] sm:$0xff]
    %v87 = vld [vmem:[#allocation5 + $0x48] sm:$0xff]
    %v88 = vld [vmem:[#allocation5 + $0x50] sm:$0xff]
    %v89 = vld [vmem:[#allocation5 + $0x58] sm:$0xff]
    %v90 = vld [vmem:[#allocation5 + $0x60] sm:$0xff]
    %v91 = vld [vmem:[#allocation5 + $0x68] sm:$0xff]
    %v92 = vld [vmem:[#allocation5 + $0x70] sm:$0xff]
    %v93 = vld [vmem:[#allocation5 + $0x78] sm:$0xff]
    %v94 = vld [vmem:[%s4] sm:$0x1]
    %v95 = vlaneseq
    %v96 = vshrl.u32 %v95, 7
    %v97 = vsub.s32 0, %v96
    %v98 = vrot.slane %v94, %v97
    %99 = vmatprep.subr.mxu0 0.0
    %100 = vmatpush1.msra.mxu0 %v78
    %101 = vmatprep.subr.mxu0 0.0
    %102 = vmatpush1.msra.mxu0 %v79
    %103 = vmatprep.subr.mxu0 0.0
    %104 = vmatpush1.msra.mxu0 %v80
    %105 = vmatprep.subr.mxu0 0.0
    %106 = vmatpush1.msra.mxu0 %v81
    %107 = vmatprep.subr.mxu0 0.0
    %108 = vmatpush1.msra.mxu0 %v82
    %109 = vmatprep.subr.mxu0 0.0
    %110 = vmatpush1.msra.mxu0 %v83
    %111 = vmatprep.subr.mxu0 0.0
    %112 = vmatpush1.msra.mxu0 %v84
    %113 = vmatprep.subr.mxu0 0.0
    %114 = vmatpush1.msra.mxu0 %v85
    %115 = vmatprep.subr.mxu0 0.0
    %116 = vmatpush1.msra.mxu0 %v86
    %117 = vmatprep.subr.mxu0 0.0
    %118 = vmatpush1.msra.mxu0 %v87
    %119 = vmatprep.subr.mxu0 0.0
    %120 = vmatpush1.msra.mxu0 %v88
    %121 = vmatprep.subr.mxu0 0.0
    %122 = vmatpush1.msra.mxu0 %v89
    %123 = vmatprep.subr.mxu0 0.0
    %124 = vmatpush1.msra.mxu0 %v90
    %125 = vmatprep.subr.mxu0 0.0
    %126 = vmatpush1.msra.mxu0 %v91
    %127 = vmatprep.subr.mxu0 0.0
    %128 = vmatpush1.msra.mxu0 %v92
    %129 = vmatprep.subr.mxu0 0.0
    %130 = vmatpush1.msra.mxu0 %v93
    %131 = vmatprep.subr.mxu0 0.0
    %132 = vmatpush1.msra.mxu0 0.0
    %133 = vmatprep.subr.mxu0 0.0
    %134 = vmatpush1.msra.mxu0 0.0
    %135 = vmatprep.subr.mxu0 0.0
    %136 = vmatpush1.msra.mxu0 0.0
    %137 = vmatprep.subr.mxu0 0.0
    %138 = vmatpush1.msra.mxu0 0.0
    %139 = vmatprep.subr.mxu0 0.0
    %140 = vmatpush1.msra.mxu0 0.0
    %141 = vmatprep.subr.mxu0 0.0
    %142 = vmatpush1.msra.mxu0 0.0
    %143 = vmatprep.subr.mxu0 0.0
    %144 = vmatpush1.msra.mxu0 0.0
    %145 = vmatprep.subr.mxu0 0.0
    %146 = vmatpush1.msra.mxu0 0.0
    %147 = vmatprep.subr.mxu0 0.0
    %148 = vmatpush1.msra.mxu0 0.0
    %149 = vmatprep.subr.mxu0 0.0
    %150 = vmatpush1.msra.mxu0 0.0
    %151 = vmatprep.subr.mxu0 0.0
    %152 = vmatpush1.msra.mxu0 0.0
    %153 = vmatprep.subr.mxu0 0.0
    %154 = vmatpush1.msra.mxu0 0.0
    %155 = vmatprep.subr.mxu0 0.0
    %156 = vmatpush1.msra.mxu0 0.0
    %157 = vmatprep.subr.mxu0 0.0
    %158 = vmatpush1.msra.mxu0 0.0
    %159 = vmatprep.subr.mxu0 0.0
    %160 = vmatpush1.msra.mxu0 0.0
    %161 = vmatprep.subr.mxu0 0.0
    %162 = vmatpush1.msra.mxu0 0.0
    %163 = vmatprep.mubr.f32.mxu0 0.0
    %164 = vmatmul.mubr.f32.gmra.mrb[0].mxu0 %v77
    %v165 = vpop.f32.mrb[0].mxu0
    %v166 = vadd.f32 %v98, %v165
    %v167 = vpop.f32.mrb[0].mxu0
    %168 = vdwg.mxu0
    %v169 = vmax.f32 %v166, 0.0
    %v170 = vld [vmem:[#allocation7] sm:$0xff]
    %v171 = vld [vmem:[#allocation7 + $0x8] sm:$0xff]
    %v172 = vld [vmem:[#allocation7 + $0x10] sm:$0xff]
    %v173 = vld [vmem:[#allocation7 + $0x18] sm:$0xff]
    %v174 = vld [vmem:[#allocation7 + $0x20] sm:$0xff]
    %v175 = vld [vmem:[#allocation7 + $0x28] sm:$0xff]
    %v176 = vld [vmem:[#allocation7 + $0x30] sm:$0xff]
    %v177 = vld [vmem:[#allocation7 + $0x38] sm:$0xff]
    %v178 = vld [vmem:[#allocation7 + $0x40] sm:$0xff]
    %v179 = vld [vmem:[#allocation7 + $0x48] sm:$0xff]
    %v180 = vld [vmem:[#allocation7 + $0x50] sm:$0xff]
    %v181 = vld [vmem:[#allocation7 + $0x58] sm:$0xff]
    %v182 = vld [vmem:[#allocation7 + $0x60] sm:$0xff]
    %v183 = vld [vmem:[#allocation7 + $0x68] sm:$0xff]
    %v184 = vld [vmem:[#allocation7 + $0x70] sm:$0xff]
    %v185 = vld [vmem:[#allocation7 + $0x78] sm:$0xff]
    %v186 = vld [vmem:[%s4 + $0x1] sm:$0x1]
    %v187 = vlaneseq
    %v188 = vshrl.u32 %v187, 7
    %v189 = vsub.s32 0, %v188
    %v190 = vrot.slane %v186, %v189
    %191 = vmatprep.subr.mxu0 0.0
    %192 = vmatpush1.msra.mxu0 %v170
    %193 = vmatprep.subr.mxu0 0.0
    %194 = vmatpush1.msra.mxu0 %v171
    %195 = vmatprep.subr.mxu0 0.0
    %196 = vmatpush1.msra.mxu0 %v172
    %197 = vmatprep.subr.mxu0 0.0
    %198 = vmatpush1.msra.mxu0 %v173
    %199 = vmatprep.subr.mxu0 0.0
    %200 = vmatpush1.msra.mxu0 %v174
    %201 = vmatprep.subr.mxu0 0.0
    %202 = vmatpush1.msra.mxu0 %v175
    %203 = vmatprep.subr.mxu0 0.0
    %204 = vmatpush1.msra.mxu0 %v176
    %205 = vmatprep.subr.mxu0 0.0
    %206 = vmatpush1.msra.mxu0 %v177
    %207 = vmatprep.subr.mxu0 0.0
    %208 = vmatpush1.msra.mxu0 %v178
    %209 = vmatprep.subr.mxu0 0.0
    %210 = vmatpush1.msra.mxu0 %v179
    %211 = vmatprep.subr.mxu0 0.0
    %212 = vmatpush1.msra.mxu0 %v180
    %213 = vmatprep.subr.mxu0 0.0
    %214 = vmatpush1.msra.mxu0 %v181
    %215 = vmatprep.subr.mxu0 0.0
    %216 = vmatpush1.msra.mxu0 %v182
    %217 = vmatprep.subr.mxu0 0.0
    %218 = vmatpush1.msra.mxu0 %v183
    %219 = vmatprep.subr.mxu0 0.0
    %220 = vmatpush1.msra.mxu0 %v184
    %221 = vmatprep.subr.mxu0 0.0
    %222 = vmatpush1.msra.mxu0 %v185
    %223 = vmatprep.subr.mxu0 0.0
    %224 = vmatpush1.msra.mxu0 0.0
    %225 = vmatprep.subr.mxu0 0.0
    %226 = vmatpush1.msra.mxu0 0.0
    %227 = vmatprep.subr.mxu0 0.0
    %228 = vmatpush1.msra.mxu0 0.0
    %229 = vmatprep.subr.mxu0 0.0
    %230 = vmatpush1.msra.mxu0 0.0
    %231 = vmatprep.subr.mxu0 0.0
    %232 = vmatpush1.msra.mxu0 0.0
    %233 = vmatprep.subr.mxu0 0.0
    %234 = vmatpush1.msra.mxu0 0.0
    %235 = vmatprep.subr.mxu0 0.0
    %236 = vmatpush1.msra.mxu0 0.0
    %237 = vmatprep.subr.mxu0 0.0
    %238 = vmatpush1.msra.mxu0 0.0
    %239 = vmatprep.subr.mxu0 0.0
    %240 = vmatpush1.msra.mxu0 0.0
    %241 = vmatprep.subr.mxu0 0.0
    %242 = vmatpush1.msra.mxu0 0.0
    %243 = vmatprep.subr.mxu0 0.0
    %244 = vmatpush1.msra.mxu0 0.0
    %245 = vmatprep.subr.mxu0 0.0
    %246 = vmatpush1.msra.mxu0 0.0
    %247 = vmatprep.subr.mxu0 0.0
    %248 = vmatpush1.msra.mxu0 0.0
    %249 = vmatprep.subr.mxu0 0.0
    %250 = vmatpush1.msra.mxu0 0.0
    %251 = vmatprep.subr.mxu0 0.0
    %252 = vmatpush1.msra.mxu0 0.0
    %253 = vmatprep.subr.mxu0 0.0
    %254 = vmatpush1.msra.mxu0 0.0
    %255 = vmatprep.mubr.f32.mxu0 0.0
    %256 = vmatmul.mubr.f32.gmra.mrb[0].mxu0 %v169
    %v257 = vpop.f32.mrb[0].mxu0
    %v258 = vadd.f32 %v190, %v257
    %v259 = vpop.f32.mrb[0].mxu0
    %260 = vdwg.mxu0
    %v261 = vmax.f32 %v258, 0.0
    %v262 = vld [vmem:[#allocation8] sm:$0xff]
    %v263 = vld [vmem:[#allocation8 + $0x8] sm:$0xff]
    %v264 = vld [vmem:[#allocation8 + $0x10] sm:$0xff]
    %v265 = vld [vmem:[#allocation8 + $0x18] sm:$0xff]
    %v266 = vld [vmem:[#allocation8 + $0x20] sm:$0xff]
    %v267 = vld [vmem:[#allocation8 + $0x28] sm:$0xff]
    %v268 = vld [vmem:[#allocation8 + $0x30] sm:$0xff]
    %v269 = vld [vmem:[#allocation8 + $0x38] sm:$0xff]
    %v270 = vld [vmem:[#allocation8 + $0x40] sm:$0xff]
    %v271 = vld [vmem:[#allocation8 + $0x48] sm:$0xff]
    %v272 = vld [vmem:[#allocation8 + $0x50] sm:$0xff]
    %v273 = vld [vmem:[#allocation8 + $0x58] sm:$0xff]
    %v274 = vld [vmem:[#allocation8 + $0x60] sm:$0xff]
    %v275 = vld [vmem:[#allocation8 + $0x68] sm:$0xff]
    %v276 = vld [vmem:[#allocation8 + $0x70] sm:$0xff]
    %v277 = vld [vmem:[#allocation8 + $0x78] sm:$0xff]
    %v278 = vld [vmem:[%s4 + $0x2] sm:$0x1]
    %v279 = vlaneseq
    %v280 = vshrl.u32 %v279, 7
    %v281 = vsub.s32 0, %v280
    %v282 = vrot.slane %v278, %v281
    %283 = vmatprep.subr.mxu0 0.0
    %284 = vmatpush1.msra.mxu0 %v262
    %285 = vmatprep.subr.mxu0 0.0
    %286 = vmatpush1.msra.mxu0 %v263
    %287 = vmatprep.subr.mxu0 0.0
    %288 = vmatpush1.msra.mxu0 %v264
    %289 = vmatprep.subr.mxu0 0.0
    %290 = vmatpush1.msra.mxu0 %v265
    %291 = vmatprep.subr.mxu0 0.0
    %292 = vmatpush1.msra.mxu0 %v266
    %293 = vmatprep.subr.mxu0 0.0
    %294 = vmatpush1.msra.mxu0 %v267
    %295 = vmatprep.subr.mxu0 0.0
    %296 = vmatpush1.msra.mxu0 %v268
    %297 = vmatprep.subr.mxu0 0.0
    %298 = vmatpush1.msra.mxu0 %v269
    %299 = vmatprep.subr.mxu0 0.0
    %300 = vmatpush1.msra.mxu0 %v270
    %301 = vmatprep.subr.mxu0 0.0
    %302 = vmatpush1.msra.mxu0 %v271
    %303 = vmatprep.subr.mxu0 0.0
    %304 = vmatpush1.msra.mxu0 %v272
    %305 = vmatprep.subr.mxu0 0.0
    %306 = vmatpush1.msra.mxu0 %v273
    %307 = vmatprep.subr.mxu0 0.0
    %308 = vmatpush1.msra.mxu0 %v274
    %309 = vmatprep.subr.mxu0 0.0
    %310 = vmatpush1.msra.mxu0 %v275
    %311 = vmatprep.subr.mxu0 0.0
    %312 = vmatpush1.msra.mxu0 %v276
    %313 = vmatprep.subr.mxu0 0.0
    %314 = vmatpush1.msra.mxu0 %v277
    %315 = vmatprep.subr.mxu0 0.0
    %316 = vmatpush1.msra.mxu0 0.0
    %317 = vmatprep.subr.mxu0 0.0
    %318 = vmatpush1.msra.mxu0 0.0
    %319 = vmatprep.subr.mxu0 0.0
    %320 = vmatpush1.msra.mxu0 0.0
    %321 = vmatprep.subr.mxu0 0.0
    %322 = vmatpush1.msra.mxu0 0.0
    %323 = vmatprep.subr.mxu0 0.0
    %324 = vmatpush1.msra.mxu0 0.0
    %325 = vmatprep.subr.mxu0 0.0
    %326 = vmatpush1.msra.mxu0 0.0
    %327 = vmatprep.subr.mxu0 0.0
    %328 = vmatpush1.msra.mxu0 0.0
    %329 = vmatprep.subr.mxu0 0.0
    %330 = vmatpush1.msra.mxu0 0.0
    %331 = vmatprep.subr.mxu0 0.0
    %332 = vmatpush1.msra.mxu0 0.0
    %333 = vmatprep.subr.mxu0 0.0
    %334 = vmatpush1.msra.mxu0 0.0
    %335 = vmatprep.subr.mxu0 0.0
    %336 = vmatpush1.msra.mxu0 0.0
    %337 = vmatprep.subr.mxu0 0.0
    %338 = vmatpush1.msra.mxu0 0.0
    %339 = vmatprep.subr.mxu0 0.0
    %340 = vmatpush1.msra.mxu0 0.0
    %341 = vmatprep.subr.mxu0 0.0
    %342 = vmatpush1.msra.mxu0 0.0
    %343 = vmatprep.subr.mxu0 0.0
    %344 = vmatpush1.msra.mxu0 0.0
    %345 = vmatprep.subr.mxu0 0.0
    %346 = vmatpush1.msra.mxu0 0.0
    %347 = vmatprep.mubr.f32.mxu0 0.0
    %348 = vmatmul.mubr.f32.gmra.mrb[0].mxu0 %v261
    %v349 = vpop.f32.mrb[0].mxu0
    %v350 = vadd.f32 %v282, %v349
    %v351 = vpop.f32.mrb[0].mxu0
    %352 = vdwg.mxu0
    %v353 = vlaneseq
    %v354 = vand.u32 %v353, 127
    %vm355 = vcmp.eq.s32.totalorder %v354, 4
    %v356 = vsel %vm355, %v350, 0.0
    %357 = vadd.xlane.f32.xlu0 %v356
    %v358 = vpop.xlane.xlu0 %357
    %v359 = vadd.f32 %v350, %v358
    %360 = vst [vmem:[#allocation10] sm:$0xff] %v359
    %v361 = vlaneseq
    %v362 = vshrl.u32 %v361, 7
    %s363 = smul.u32 0, 8
    %v364 = vstv %s363
    %v365 = vadd.s32 %v362, %v364
    %vm366 = vcmp.lt.s32.totalorder %v365, 8
    %v367 = vsel %vm366, 1, 0
    %vm368 = vcmp.eq.s32.totalorder %v367, 1
    %v369 = vsel %vm368, %v350, 0.0
    %v370 = vrot.slane %v369, 4
    %v371 = vadd.f32 %v369, %v370
    %v372 = vrot.slane %v371, 2
    %v373 = vadd.f32 %v371, %v372
    %v374 = vrot.slane %v373, 1
    %v375 = vadd.f32 %v373, %v374
    %376 = vst [vmem:[#allocation11] sm:$0xff] %v375
    // Predicated region
    $region38: #{tpu_custom_call.1} parent=1 // pred_check
      _
    $region39: #{tpu_custom_call.1} parent=1 // pred_check_branch
      %378 = sbr.rel (0) target = $region41
    $region40: #{tpu_custom_call.1} parent=1 // pred_region
      %s380 = ssub.s32 128, 128
      %381 = vsyncadd [#allocation4], %s380
      %s383 = sshll.u32 [#allocation10], 4
      %s384 = int_to_ptr.vmem [resolvable:$true] %s383
      %386 = dma.vmem_to_hbm [thread:$0]  %s384, 128, %s5, [#allocation4]
    $region41: #{tpu_custom_call.1} parent=1 // pred_fallthru
      _
    // Predicated region
    $region42: #{tpu_custom_call.1} parent=1 // pred_check
      _
    $region43: #{tpu_custom_call.1} parent=1 // pred_check_branch
      %388 = sbr.rel (0) target = $region45
    $region44: #{tpu_custom_call.1} parent=1 // pred_region
      %s390 = ssub.s32 128, 128
      %391 = vsyncadd [#allocation12], %s390
      %s393 = sshll.u32 [#allocation11], 4
      %s394 = int_to_ptr.vmem [resolvable:$true] %s393
      %396 = dma.vmem_to_hbm [thread:$0]  %s394, 128, %s6, [#allocation12]
    $region45: #{tpu_custom_call.1} parent=1 // pred_fallthru
      _
    // Predicated region
    $region46: #{tpu_custom_call.1} parent=1 // pred_check
      _
    $region47: #{tpu_custom_call.1} parent=1 // pred_check_branch
      %398 = sbr.rel (0) target = $region49
    $region48: #{tpu_custom_call.1} parent=1 // pred_region
      %399 = dma.done [#allocation4], 128
    $region49: #{tpu_custom_call.1} parent=1 // pred_fallthru
      _
    // Predicated region
    $region50: #{tpu_custom_call.1} parent=1 // pred_check
      _
    $region51: #{tpu_custom_call.1} parent=1 // pred_check_branch
      %401 = sbr.rel (0) target = $region53
    $region52: #{tpu_custom_call.1} parent=1 // pred_region
      %402 = dma.done [#allocation12], 128
    $region53: #{tpu_custom_call.1} parent=1 // pred_fallthru
      _
    %403 = vsyncpa [#allocation3], 1
    %404 = vsyncpa [#allocation6], 1
    %405 = vsyncpa [#allocation9], 1
    %406 = vsyncpa [#allocation4], 1
    %407 = vsyncpa [#allocation12], 1

</llo_original>
